<compile_context>
chip_gen: v7x
topology: tpu7x:2x2x1
jax: 0.10.0
libtpu: 0.0.40
codegen_flags: <defaults>
</compile_context>

<pallas_src>
import functools

import jax
import jax.numpy as jnp
from jax.experimental import pallas as pl
from jax.experimental.pallas import tpu as pltpu


# ----------------------------- model configuration -----------------------------
ND = 2          # dictionary_number
M = 16          # feature_size
N = 32          # dictionary_size
K = 8           # number of input columns
STAGES = 4      # stage_number
RHO = 1.0       # initial_rho    (train_rho=False)
LAMBDA = 0.1    # initial_lambda (train_lambda=False)
PAD = 128       # lane-padded ND*N (64 -> 128 for full-vreg / unmasked stores)


# ----------------------------------- kernel -----------------------------------
def admm_sr_kernel(st_ref, dcat_ref, ainv_ref, y_t_ref, *, stages, rho, alpha):
    """Single-program ADMM solve, all dictionaries batched, lane-padded to 128.

    st_ref:   (Kp, M)     S^T                                              (VMEM)
    dcat_ref: (M, PAD)    [D_0 | D_1 | 0-pad] column-concatenated dicts    (VMEM)
    ainv_ref: (PAD, PAD)  block-diagonal (D^T D + rho I)^-1, zero-padded   (VMEM)
    y_t_ref:  (Kp, PAD)   output Y^T (lane-dense)                          (VMEM)
    rho, alpha: compile-time Python floats.
    """
    ST = st_ref[...]                       # (Kp, M)
    Dcat = dcat_ref[...]                   # (M, PAD)
    Ainv = ainv_ref[...]                   # (PAD, PAD), symmetric per block

    # D^T S (transposed layout), fused into the kernel preamble.
    DTS_T = jnp.dot(ST, Dcat, preferred_element_type=jnp.float32)   # (Kp, PAD)

    # ---- stage 0: Y = U = 0  =>  b = DTS^T, V = X ----
    X = jnp.dot(DTS_T, Ainv, preferred_element_type=jnp.float32)
    V = X
    clipped = jnp.clip(V, -alpha, alpha)
    Y = V - clipped                        # soft threshold
    U = clipped                            # U + (X - Y) == clip(V)

    # ---- stages 1..stages-1 (small fixed count -> fully unrolled) ----
    for _ in range(stages - 1):
        if rho == 1.0:
            b = DTS_T + (Y - U)
        else:
            b = DTS_T + rho * (Y - U)
        # X^T = b^T @ Ainv  (Ainv symmetric block-diagonal => exact).
        X = jnp.dot(b, Ainv, preferred_element_type=jnp.float32)
        V = X + U
        clipped = jnp.clip(V, -alpha, alpha)
        Y = V - clipped
        U = clipped

    y_t_ref[...] = Y.astype(y_t_ref.dtype)


# ------------------------- D-dependent constants (cached) -------------------------
def prepare_constants(D, rho, pad=PAD):
    """Compute once per dictionary/rho; independent of the input signal S."""
    nd, m, n = D.shape

    # (D^T D + rho I)^-1 per dictionary via Cholesky (== cholesky_solve).
    A = jnp.einsum("bmn,bmp->bnp", D, D) + rho * jnp.eye(n, dtype=D.dtype)
    L = jnp.linalg.cholesky(A)
    eye = jnp.eye(n, dtype=D.dtype)
    Ainv = jax.vmap(lambda Lb: jax.scipy.linalg.cho_solve((Lb, True), eye))(L)

    # Block-diagonal inverse, zero-padded to (PAD, PAD).
    Ainv_bd = jnp.zeros((pad, pad), dtype=jnp.float32)
    for i in range(nd):
        Ainv_bd = Ainv_bd.at[i * n:(i + 1) * n, i * n:(i + 1) * n].set(Ainv[i])

    # Column-concatenated dictionary, zero-padded to (M, PAD):
    # D_cat[:, i*n:(i+1)*n] = D[i].
    D_cat = jnp.zeros((m, pad), dtype=jnp.float32)
    D_cat = D_cat.at[:, :nd * n].set(
        jnp.transpose(D, (1, 0, 2)).reshape(m, nd * n).astype(jnp.float32))

    return D_cat, Ainv_bd


# ------------------------------------ wrapper ------------------------------------
def admm_sr_forward(S, D_cat, Ainv_bd, rho, lam, stages, nd, n):
    """Pallas forward reproducing AdmmSrNet.forward; returns Y: (ND, N, K)."""
    m, k = S.shape
    pad = Ainv_bd.shape[-1]
    k_pad = -(-k // 8) * 8                 # sublane alignment (no-op for K=8)

    ST = jnp.zeros((k_pad, m), dtype=jnp.float32).at[:k, :].set(
        S.T.astype(jnp.float32))

    kernel = functools.partial(
        admm_sr_kernel,
        stages=stages,
        rho=float(rho),
        alpha=float(lam) / float(rho),
    )

    y_t = pl.pallas_call(
        kernel,
        out_shape=jax.ShapeDtypeStruct((k_pad, pad), jnp.float32),
        grid_spec=pl.GridSpec(
            grid=(1,),
            in_specs=[
                pl.BlockSpec((k_pad, m), lambda i: (0, 0)),     # S^T
                pl.BlockSpec((m, pad), lambda i: (0, 0)),       # D_cat
                pl.BlockSpec((pad, pad), lambda i: (0, 0)),     # Ainv_bd
            ],
            out_specs=pl.BlockSpec((k_pad, pad), lambda i: (0, 0)),  # Y^T
        ),
        compiler_params=pltpu.CompilerParams(
            dimension_semantics=("arbitrary",),
        ),
    )(ST, D_cat, Ainv_bd)

    # (Kp, PAD) -> slice pad away -> (K, ND*N) -> (ND, N, K)
    return y_t[:k, :nd * n].reshape(k, nd, n).transpose(1, 2, 0)


# ------------------------------ pure-JAX reference ------------------------------
def admm_sr_reference(D, S, rho, lam, stages):
    n = D.shape[-1]
    DTS = jnp.einsum("bmn,mk->bnk", D, S)
    A = jnp.einsum("bmn,bmp->bnp", D, D) + rho * jnp.eye(n, dtype=D.dtype)
    L = jnp.linalg.cholesky(A)
    Y = jnp.zeros_like(DTS)
    U = jnp.zeros_like(DTS)
    for _ in range(stages):
        b = DTS + rho * (Y - U)
        X = jax.vmap(lambda Lb, bb: jax.scipy.linalg.cho_solve((Lb, True), bb))(L, b)
        V = X + U
        Y = jnp.sign(V) * jnp.maximum(jnp.abs(V) - lam / rho, 0.0)
        U = U + (X - Y)
    return Y


# ------------------------------------ main -------------------------------------
if __name__ == "__main__":
    key = jax.random.PRNGKey(0)
    k_dict, k_sig = jax.random.split(key)

    # Dictionary init: torch.rand -> uniform [0,1), then L2-normalize along
    # the feature axis (dim=-2), dict_constraint = 1.0.
    d0 = jax.random.uniform(k_dict, (ND, M, N), dtype=jnp.float32)
    norm = jnp.sqrt(jnp.sum(d0 * d0, axis=-2, keepdims=True))
    D = d0 / jnp.maximum(norm, 1e-12)

    # Input signal S: (M, K).
    S = jax.random.normal(k_sig, (M, K), dtype=jnp.float32)

    # D-dependent constants computed once, outside the per-call hot path.
    D_cat, Ainv_bd = prepare_constants(D, RHO)
    D_cat = jax.block_until_ready(D_cat)
    Ainv_bd = jax.block_until_ready(Ainv_bd)

    Y = admm_sr_forward(S, D_cat, Ainv_bd, RHO, LAMBDA, STAGES, ND, N)
    Y = jax.block_until_ready(Y)

    Y_ref = admm_sr_reference(D, S, RHO, LAMBDA, STAGES)

    assert Y.shape == (ND, N, K)
    assert jnp.allclose(Y, Y_ref, atol=1e-4, rtol=1e-4), (
        f"max abs err = {jnp.max(jnp.abs(Y - Y_ref))}"
    )
    print("KERNEL_OK")
</pallas_src>

<mosaic_0001>
module attributes {stable_mosaic.version = 11 : i64} {
  func.func @admm_sr_kernel(%arg0: i32, %arg1: memref<8x16xf32, #tpu.memory_space<vmem>>, %arg2: memref<16x128xf32, #tpu.memory_space<vmem>>, %arg3: memref<128x128xf32, #tpu.memory_space<vmem>>, %arg4: memref<8x128xf32, #tpu.memory_space<vmem>>) attributes {dimension_semantics = [#tpu.dimension_semantics<arbitrary>], iteration_bounds = array<i64: 1>, scalar_prefetch = 0 : i64, scratch_operands = 0 : i64, tpu.core_type = #tpu.core_type<tc>, window_params = [{pipeline_mode = #tpu.pipeline_mode<synchronous>, transform_indices = @transform_0, window_bounds = array<i64: 8, 16>}, {pipeline_mode = #tpu.pipeline_mode<synchronous>, transform_indices = @transform_1, window_bounds = array<i64: 16, 128>}, {pipeline_mode = #tpu.pipeline_mode<synchronous>, transform_indices = @transform_2, window_bounds = array<i64: 128, 128>}, {pipeline_mode = #tpu.pipeline_mode<synchronous>, transform_indices = @transform_3, window_bounds = array<i64: 8, 128>}]} {
    %c0 = arith.constant 0 : index
    %c0_0 = arith.constant 0 : index
    %0 = vector.load %arg1[%c0, %c0_0] : memref<8x16xf32, #tpu.memory_space<vmem>>, vector<8x16xf32>
    %c0_1 = arith.constant 0 : index
    %c0_2 = arith.constant 0 : index
    %1 = vector.load %arg2[%c0_1, %c0_2] : memref<16x128xf32, #tpu.memory_space<vmem>>, vector<16x128xf32>
    %c0_3 = arith.constant 0 : index
    %c0_4 = arith.constant 0 : index
    %2 = vector.load %arg3[%c0_3, %c0_4] : memref<128x128xf32, #tpu.memory_space<vmem>>, vector<128x128xf32>
    %cst = arith.constant dense<0.000000e+00> : vector<8x128xf32>
    %3 = tpu.matmul %0, %1, %cst {dimension_numbers = #tpu.dot_dimension_numbers<[1], [0], [0], [1], [0, 0, 1, 1], [], []>} : vector<8x16xf32>, vector<16x128xf32>, vector<8x128xf32> -> vector<8x128xf32>
    %cst_5 = arith.constant dense<0.000000e+00> : vector<8x128xf32>
    %4 = tpu.matmul %3, %2, %cst_5 {dimension_numbers = #tpu.dot_dimension_numbers<[1], [0], [0], [1], [0, 0, 1, 1], [], []>} : vector<8x128xf32>, vector<128x128xf32>, vector<8x128xf32> -> vector<8x128xf32>
    %cst_6 = arith.constant -1.000000e-01 : f32
    %cst_7 = arith.constant 1.000000e-01 : f32
    %5 = vector.broadcast %cst_6 : f32 to vector<8x128xf32>
    %6 = arith.maximumf %5, %4 : vector<8x128xf32>
    %7 = vector.broadcast %cst_7 : f32 to vector<8x128xf32>
    %8 = arith.minimumf %7, %6 : vector<8x128xf32>
    %9 = arith.subf %4, %8 : vector<8x128xf32>
    %10 = arith.subf %9, %8 : vector<8x128xf32>
    %11 = arith.addf %3, %10 : vector<8x128xf32>
    %cst_8 = arith.constant dense<0.000000e+00> : vector<8x128xf32>
    %12 = tpu.matmul %11, %2, %cst_8 {dimension_numbers = #tpu.dot_dimension_numbers<[1], [0], [0], [1], [0, 0, 1, 1], [], []>} : vector<8x128xf32>, vector<128x128xf32>, vector<8x128xf32> -> vector<8x128xf32>
    %13 = arith.addf %12, %8 : vector<8x128xf32>
    %cst_9 = arith.constant -1.000000e-01 : f32
    %cst_10 = arith.constant 1.000000e-01 : f32
    %14 = vector.broadcast %cst_9 : f32 to vector<8x128xf32>
    %15 = arith.maximumf %14, %13 : vector<8x128xf32>
    %16 = vector.broadcast %cst_10 : f32 to vector<8x128xf32>
    %17 = arith.minimumf %16, %15 : vector<8x128xf32>
    %18 = arith.subf %13, %17 : vector<8x128xf32>
    %19 = arith.subf %18, %17 : vector<8x128xf32>
    %20 = arith.addf %3, %19 : vector<8x128xf32>
    %cst_11 = arith.constant dense<0.000000e+00> : vector<8x128xf32>
    %21 = tpu.matmul %20, %2, %cst_11 {dimension_numbers = #tpu.dot_dimension_numbers<[1], [0], [0], [1], [0, 0, 1, 1], [], []>} : vector<8x128xf32>, vector<128x128xf32>, vector<8x128xf32> -> vector<8x128xf32>
    %22 = arith.addf %21, %17 : vector<8x128xf32>
    %cst_12 = arith.constant -1.000000e-01 : f32
    %cst_13 = arith.constant 1.000000e-01 : f32
    %23 = vector.broadcast %cst_12 : f32 to vector<8x128xf32>
    %24 = arith.maximumf %23, %22 : vector<8x128xf32>
    %25 = vector.broadcast %cst_13 : f32 to vector<8x128xf32>
    %26 = arith.minimumf %25, %24 : vector<8x128xf32>
    %27 = arith.subf %22, %26 : vector<8x128xf32>
    %28 = arith.subf %27, %26 : vector<8x128xf32>
    %29 = arith.addf %3, %28 : vector<8x128xf32>
    %cst_14 = arith.constant dense<0.000000e+00> : vector<8x128xf32>
    %30 = tpu.matmul %29, %2, %cst_14 {dimension_numbers = #tpu.dot_dimension_numbers<[1], [0], [0], [1], [0, 0, 1, 1], [], []>} : vector<8x128xf32>, vector<128x128xf32>, vector<8x128xf32> -> vector<8x128xf32>
    %31 = arith.addf %30, %26 : vector<8x128xf32>
    %cst_15 = arith.constant -1.000000e-01 : f32
    %cst_16 = arith.constant 1.000000e-01 : f32
    %32 = vector.broadcast %cst_15 : f32 to vector<8x128xf32>
    %33 = arith.maximumf %32, %31 : vector<8x128xf32>
    %34 = vector.broadcast %cst_16 : f32 to vector<8x128xf32>
    %35 = arith.minimumf %34, %33 : vector<8x128xf32>
    %36 = arith.subf %31, %35 : vector<8x128xf32>
    %c0_17 = arith.constant 0 : index
    %c0_18 = arith.constant 0 : index
    %37 = vector.load %arg4[%c0_17, %c0_18] : memref<8x128xf32, #tpu.memory_space<vmem>>, vector<8x128xf32>
    tpu.vector_store %arg4[%c0_17, %c0_18], %36 {strides = array<i32>} : memref<8x128xf32, #tpu.memory_space<vmem>>, vector<8x128xf32>,
    return
  }
  func.func @transform_0(%arg0: i32) -> (i32, i32) {
    %c0_i32 = arith.constant 0 : i32
    %c0_i32_0 = arith.constant 0 : i32
    %c0_i32_1 = arith.constant 0 : i32
    return %c0_i32, %c0_i32_0 : i32, i32
  }
  func.func @transform_1(%arg0: i32) -> (i32, i32) {
    %c0_i32 = arith.constant 0 : i32
    %c0_i32_0 = arith.constant 0 : i32
    %c0_i32_1 = arith.constant 0 : i32
    return %c0_i32, %c0_i32_0 : i32, i32
  }
  func.func @transform_2(%arg0: i32) -> (i32, i32) {
    %c0_i32 = arith.constant 0 : i32
    %c0_i32_0 = arith.constant 0 : i32
    %c0_i32_1 = arith.constant 0 : i32
    return %c0_i32, %c0_i32_0 : i32, i32
  }
  func.func @transform_3(%arg0: i32) -> (i32, i32) {
    %c0_i32 = arith.constant 0 : i32
    %c0_i32_0 = arith.constant 0 : i32
    %c0_i32_1 = arith.constant 0 : i32
    return %c0_i32, %c0_i32_0 : i32, i32
  }
}

</mosaic_0001>

<llo_original>
// kernel: tpu_custom_call.1
$region0: #{tpu_custom_call.1}
  #allocation0 [shape = 'u32[]', space=smem, size = 0x4, offset = 0x4, fixed_abs, tag = 'smem constant byte address 0x4 - core index']
  #allocation1 [shape = 'u32[144,128]{1,0:T(1,128)}', space=vmem, size = 0x12000, scoped, tag = 'internal scratch']
  %s0 = inlined_call_operand.hbm [shape: f32[8,16], index: 0, kind: input, shape index: {}]
  %s1 = inlined_call_operand.hbm [shape: f32[16,128], index: 1, kind: input, shape index: {}]
  %s2 = inlined_call_operand.hbm [shape: f32[128,128], index: 2, kind: input, shape index: {}]
  %s3 = inlined_call_operand.hbm [shape: f32[8,128], index: 3, kind: output, shape index: {}]
  %s4 = sld [smem:[#allocation0]]
  $region34: #{tpu_custom_call.1} parent=0
    _
  %s6 = ssub.s32 1, %s4
  %s7 = scalar_select 0, %s6, %s4
  $region1: #{tpu_custom_call.1} parent=0
    #allocation2 [shape = 'u8[4096]{0}', space=vmem, size = 0x1000, scoped, tag = 'input window, operand 0, single buffered']
    #allocation3 [shape = 's32[1]{0}', space=sflag, size = 0x4, scoped, tag = 'scoped memory for tpu_custom_call.1']
    #allocation4 [shape = 's32[1]{0}', space=sflag, size = 0x4, scoped, tag = 'scoped memory for tpu_custom_call.1']
    #allocation5 [shape = 'u8[8192]{0}', space=vmem, size = 0x2000, scoped, tag = 'input window, operand 1, single buffered']
    #allocation6 [shape = 's32[1]{0}', space=sflag, size = 0x4, scoped, tag = 'scoped memory for tpu_custom_call.1']
    #allocation7 [shape = 'u8[65536]{0}', space=vmem, size = 0x10000, scoped, tag = 'input window, operand 2, single buffered']
    #allocation8 [shape = 'u8[4096]{0}', space=vmem, size = 0x1000, scoped, tag = 'output window, operand 0, single buffered']
    %8 = vsyncpa [#allocation3], 0
    %9 = vsyncpa [#allocation6], 0
    %10 = vsyncpa [#allocation4], 0
    // Predicated region
    $region2: #{tpu_custom_call.1} parent=1 // pred_check
      _
    $region3: #{tpu_custom_call.1} parent=1 // pred_check_branch
      %12 = sbr.rel (0) target = $region5
    $region4: #{tpu_custom_call.1} parent=1 // pred_region
      %s14 = ssub.s32 128, 128
      %15 = vsyncadd [#allocation3], %s14
      %s17 = sshll.u32 [#allocation2], 4
      %s18 = int_to_ptr.vmem [resolvable:$true] %s17
      %20 = dma.hbm_to_vmem [thread:$0]  %s0, 128, %s18, [#allocation3]
    $region5: #{tpu_custom_call.1} parent=1 // pred_fallthru
      _
    // Predicated region
    $region6: #{tpu_custom_call.1} parent=1 // pred_check
      _
    $region7: #{tpu_custom_call.1} parent=1 // pred_check_branch
      %22 = sbr.rel (0) target = $region9
    $region8: #{tpu_custom_call.1} parent=1 // pred_region
      %s24 = ssub.s32 256, 256
      %25 = vsyncadd [#allocation6], %s24
      %s26 = sshll.u32 [#allocation5], 4
      %s27 = int_to_ptr.vmem [resolvable:$true] %s26
      %32 = dma.hbm_to_vmem [thread:$0]  %s1, 256, %s27, [#allocation6], 128, 128, 8
    $region9: #{tpu_custom_call.1} parent=1 // pred_fallthru
      _
    // Predicated region
    $region10: #{tpu_custom_call.1} parent=1 // pred_check
      _
    $region11: #{tpu_custom_call.1} parent=1 // pred_check_branch
      %34 = sbr.rel (0) target = $region13
    $region12: #{tpu_custom_call.1} parent=1 // pred_region
      %s36 = ssub.s32 2048, 2048
      %37 = vsyncadd [#allocation6], %s36
      %s38 = sshll.u32 [#allocation7], 4
      %s39 = int_to_ptr.vmem [resolvable:$true] %s38
      %44 = dma.hbm_to_vmem [thread:$0]  %s2, 2048, %s39, [#allocation6], 128, 128, 8
    $region13: #{tpu_custom_call.1} parent=1 // pred_fallthru
      _
    // Predicated region
    $region14: #{tpu_custom_call.1} parent=1 // pred_check
      _
    $region15: #{tpu_custom_call.1} parent=1 // pred_check_branch
      %46 = sbr.rel (0) target = $region17
    $region16: #{tpu_custom_call.1} parent=1 // pred_region
      %47 = dma.done [#allocation3], 128
    $region17: #{tpu_custom_call.1} parent=1 // pred_fallthru
      _
    // Predicated region
    $region18: #{tpu_custom_call.1} parent=1 // pred_check
      _
    $region19: #{tpu_custom_call.1} parent=1 // pred_check_branch
      %49 = sbr.rel (0) target = $region21
    $region20: #{tpu_custom_call.1} parent=1 // pred_region
      %50 = dma.done [#allocation6], 256
    $region21: #{tpu_custom_call.1} parent=1 // pred_fallthru
      _
    // Predicated region
    $region22: #{tpu_custom_call.1} parent=1 // pred_check
      _
    $region23: #{tpu_custom_call.1} parent=1 // pred_check_branch
      %52 = sbr.rel (0) target = $region25
    $region24: #{tpu_custom_call.1} parent=1 // pred_region
      %53 = dma.done [#allocation6], 2048
    $region25: #{tpu_custom_call.1} parent=1 // pred_fallthru
      _
    %v54 = vld [vmem:[#allocation2] sm:$0xff]
    %v55 = vld [vmem:[#allocation5] sm:$0xff]
    %v56 = vld [vmem:[#allocation5 + $0x8] sm:$0xff]
    %v57 = vld [vmem:[#allocation7] sm:$0xff]
    %v58 = vld [vmem:[#allocation7 + $0x8] sm:$0xff]
    %v59 = vld [vmem:[#allocation7 + $0x10] sm:$0xff]
    %v60 = vld [vmem:[#allocation7 + $0x18] sm:$0xff]
    %v61 = vld [vmem:[#allocation7 + $0x20] sm:$0xff]
    %v62 = vld [vmem:[#allocation7 + $0x28] sm:$0xff]
    %v63 = vld [vmem:[#allocation7 + $0x30] sm:$0xff]
    %v64 = vld [vmem:[#allocation7 + $0x38] sm:$0xff]
    %v65 = vld [vmem:[#allocation7 + $0x40] sm:$0xff]
    %v66 = vld [vmem:[#allocation7 + $0x48] sm:$0xff]
    %v67 = vld [vmem:[#allocation7 + $0x50] sm:$0xff]
    %v68 = vld [vmem:[#allocation7 + $0x58] sm:$0xff]
    %v69 = vld [vmem:[#allocation7 + $0x60] sm:$0xff]
    %v70 = vld [vmem:[#allocation7 + $0x68] sm:$0xff]
    %v71 = vld [vmem:[#allocation7 + $0x70] sm:$0xff]
    %v72 = vld [vmem:[#allocation7 + $0x78] sm:$0xff]
    %vm73 = vcmask 130048
    %v75 = vsel %vm73, %v54, 0
    %77 = vmatprep.subr.mxu0 0.0
    %78 = vmatpush1.msra.mxu0 %v55
    %79 = vmatprep.subr.mxu0 0.0
    %80 = vmatpush1.msra.mxu0 %v56
    %81 = vmatprep.subr.mxu0 0.0
    %82 = vmatpush1.msra.mxu0 0.0
    %83 = vmatprep.subr.mxu0 0.0
    %84 = vmatpush1.msra.mxu0 0.0
    %85 = vmatprep.subr.mxu0 0.0
    %86 = vmatpush1.msra.mxu0 0.0
    %87 = vmatprep.subr.mxu0 0.0
    %88 = vmatpush1.msra.mxu0 0.0
    %89 = vmatprep.subr.mxu0 0.0
    %90 = vmatpush1.msra.mxu0 0.0
    %91 = vmatprep.subr.mxu0 0.0
    %92 = vmatpush1.msra.mxu0 0.0
    %93 = vmatprep.subr.mxu0 0.0
    %94 = vmatpush1.msra.mxu0 0.0
    %95 = vmatprep.subr.mxu0 0.0
    %96 = vmatpush1.msra.mxu0 0.0
    %97 = vmatprep.subr.mxu0 0.0
    %98 = vmatpush1.msra.mxu0 0.0
    %99 = vmatprep.subr.mxu0 0.0
    %100 = vmatpush1.msra.mxu0 0.0
    %101 = vmatprep.subr.mxu0 0.0
    %102 = vmatpush1.msra.mxu0 0.0
    %103 = vmatprep.subr.mxu0 0.0
    %104 = vmatpush1.msra.mxu0 0.0
    %105 = vmatprep.subr.mxu0 0.0
    %106 = vmatpush1.msra.mxu0 0.0
    %107 = vmatprep.subr.mxu0 0.0
    %108 = vmatpush1.msra.mxu0 0.0
    %109 = vmatprep.subr.mxu0 0.0
    %110 = vmatpush1.msra.mxu0 0.0
    %111 = vmatprep.subr.mxu0 0.0
    %112 = vmatpush1.msra.mxu0 0.0
    %113 = vmatprep.subr.mxu0 0.0
    %114 = vmatpush1.msra.mxu0 0.0
    %115 = vmatprep.subr.mxu0 0.0
    %116 = vmatpush1.msra.mxu0 0.0
    %117 = vmatprep.subr.mxu0 0.0
    %118 = vmatpush1.msra.mxu0 0.0
    %119 = vmatprep.subr.mxu0 0.0
    %120 = vmatpush1.msra.mxu0 0.0
    %121 = vmatprep.subr.mxu0 0.0
    %122 = vmatpush1.msra.mxu0 0.0
    %123 = vmatprep.subr.mxu0 0.0
    %124 = vmatpush1.msra.mxu0 0.0
    %125 = vmatprep.subr.mxu0 0.0
    %126 = vmatpush1.msra.mxu0 0.0
    %127 = vmatprep.subr.mxu0 0.0
    %128 = vmatpush1.msra.mxu0 0.0
    %129 = vmatprep.subr.mxu0 0.0
    %130 = vmatpush1.msra.mxu0 0.0
    %131 = vmatprep.subr.mxu0 0.0
    %132 = vmatpush1.msra.mxu0 0.0
    %133 = vmatprep.subr.mxu0 0.0
    %134 = vmatpush1.msra.mxu0 0.0
    %135 = vmatprep.subr.mxu0 0.0
    %136 = vmatpush1.msra.mxu0 0.0
    %137 = vmatprep.subr.mxu0 0.0
    %138 = vmatpush1.msra.mxu0 0.0
    %139 = vmatprep.subr.mxu0 0.0
    %140 = vmatpush1.msra.mxu0 0.0
    %141 = vmatprep.mubr.f32.mxu0 0.0
    %142 = vmatmul.mubr.f32.gmra.mrb[0].mxu0 %v75
    %v143 = vpop.f32.mrb[0].mxu0
    %v144 = vadd.f32 0.0, %v143
    %v145 = vpop.f32.mrb[0].mxu0
    %146 = vdwg.mxu0
    %147 = vmatprep.subr.mxu0 0.0
    %148 = vmatpush1.msra.mxu0 %v57
    %149 = vmatprep.subr.mxu0 0.0
    %150 = vmatpush1.msra.mxu0 %v58
    %151 = vmatprep.subr.mxu0 0.0
    %152 = vmatpush1.msra.mxu0 %v59
    %153 = vmatprep.subr.mxu0 0.0
    %154 = vmatpush1.msra.mxu0 %v60
    %155 = vmatprep.subr.mxu0 0.0
    %156 = vmatpush1.msra.mxu0 %v61
    %157 = vmatprep.subr.mxu0 0.0
    %158 = vmatpush1.msra.mxu0 %v62
    %159 = vmatprep.subr.mxu0 0.0
    %160 = vmatpush1.msra.mxu0 %v63
    %161 = vmatprep.subr.mxu0 0.0
    %162 = vmatpush1.msra.mxu0 %v64
    %163 = vmatprep.subr.mxu0 0.0
    %164 = vmatpush1.msra.mxu0 %v65
    %165 = vmatprep.subr.mxu0 0.0
    %166 = vmatpush1.msra.mxu0 %v66
    %167 = vmatprep.subr.mxu0 0.0
    %168 = vmatpush1.msra.mxu0 %v67
    %169 = vmatprep.subr.mxu0 0.0
    %170 = vmatpush1.msra.mxu0 %v68
    %171 = vmatprep.subr.mxu0 0.0
    %172 = vmatpush1.msra.mxu0 %v69
    %173 = vmatprep.subr.mxu0 0.0
    %174 = vmatpush1.msra.mxu0 %v70
    %175 = vmatprep.subr.mxu0 0.0
    %176 = vmatpush1.msra.mxu0 %v71
    %177 = vmatprep.subr.mxu0 0.0
    %178 = vmatpush1.msra.mxu0 %v72
    %179 = vmatprep.subr.mxu0 0.0
    %180 = vmatpush1.msra.mxu0 0.0
    %181 = vmatprep.subr.mxu0 0.0
    %182 = vmatpush1.msra.mxu0 0.0
    %183 = vmatprep.subr.mxu0 0.0
    %184 = vmatpush1.msra.mxu0 0.0
    %185 = vmatprep.subr.mxu0 0.0
    %186 = vmatpush1.msra.mxu0 0.0
    %187 = vmatprep.subr.mxu0 0.0
    %188 = vmatpush1.msra.mxu0 0.0
    %189 = vmatprep.subr.mxu0 0.0
    %190 = vmatpush1.msra.mxu0 0.0
    %191 = vmatprep.subr.mxu0 0.0
    %192 = vmatpush1.msra.mxu0 0.0
    %193 = vmatprep.subr.mxu0 0.0
    %194 = vmatpush1.msra.mxu0 0.0
    %195 = vmatprep.subr.mxu0 0.0
    %196 = vmatpush1.msra.mxu0 0.0
    %197 = vmatprep.subr.mxu0 0.0
    %198 = vmatpush1.msra.mxu0 0.0
    %199 = vmatprep.subr.mxu0 0.0
    %200 = vmatpush1.msra.mxu0 0.0
    %201 = vmatprep.subr.mxu0 0.0
    %202 = vmatpush1.msra.mxu0 0.0
    %203 = vmatprep.subr.mxu0 0.0
    %204 = vmatpush1.msra.mxu0 0.0
    %205 = vmatprep.subr.mxu0 0.0
    %206 = vmatpush1.msra.mxu0 0.0
    %207 = vmatprep.subr.mxu0 0.0
    %208 = vmatpush1.msra.mxu0 0.0
    %209 = vmatprep.subr.mxu0 0.0
    %210 = vmatpush1.msra.mxu0 0.0
    %211 = vmatprep.mubr.f32.mxu0 0.0
    %212 = vmatmul.mubr.f32.gmra.mrb[0].mxu0 %v144
    %v213 = vpop.f32.mrb[0].mxu0
    %v214 = vadd.f32 0.0, %v213
    %v215 = vpop.f32.mrb[0].mxu0
    %216 = vdwg.mxu0
    %v217 = vmax.f32 %v214, -0.1
    %v218 = vmin.f32 %v217, 0.1
    %v219 = vsub.f32 %v214, %v218
    %v220 = vsub.f32 %v219, %v218
    %v221 = vadd.f32 %v144, %v220
    %222 = vmatprep.subr.mxu0 0.0
    %223 = vmatpush1.msra.mxu0 %v57
    %224 = vmatprep.subr.mxu0 0.0
    %225 = vmatpush1.msra.mxu0 %v58
    %226 = vmatprep.subr.mxu0 0.0
    %227 = vmatpush1.msra.mxu0 %v59
    %228 = vmatprep.subr.mxu0 0.0
    %229 = vmatpush1.msra.mxu0 %v60
    %230 = vmatprep.subr.mxu0 0.0
    %231 = vmatpush1.msra.mxu0 %v61
    %232 = vmatprep.subr.mxu0 0.0
    %233 = vmatpush1.msra.mxu0 %v62
    %234 = vmatprep.subr.mxu0 0.0
    %235 = vmatpush1.msra.mxu0 %v63
    %236 = vmatprep.subr.mxu0 0.0
    %237 = vmatpush1.msra.mxu0 %v64
    %238 = vmatprep.subr.mxu0 0.0
    %239 = vmatpush1.msra.mxu0 %v65
    %240 = vmatprep.subr.mxu0 0.0
    %241 = vmatpush1.msra.mxu0 %v66
    %242 = vmatprep.subr.mxu0 0.0
    %243 = vmatpush1.msra.mxu0 %v67
    %244 = vmatprep.subr.mxu0 0.0
    %245 = vmatpush1.msra.mxu0 %v68
    %246 = vmatprep.subr.mxu0 0.0
    %247 = vmatpush1.msra.mxu0 %v69
    %248 = vmatprep.subr.mxu0 0.0
    %249 = vmatpush1.msra.mxu0 %v70
    %250 = vmatprep.subr.mxu0 0.0
    %251 = vmatpush1.msra.mxu0 %v71
    %252 = vmatprep.subr.mxu0 0.0
    %253 = vmatpush1.msra.mxu0 %v72
    %254 = vmatprep.subr.mxu0 0.0
    %255 = vmatpush1.msra.mxu0 0.0
    %256 = vmatprep.subr.mxu0 0.0
    %257 = vmatpush1.msra.mxu0 0.0
    %258 = vmatprep.subr.mxu0 0.0
    %259 = vmatpush1.msra.mxu0 0.0
    %260 = vmatprep.subr.mxu0 0.0
    %261 = vmatpush1.msra.mxu0 0.0
    %262 = vmatprep.subr.mxu0 0.0
    %263 = vmatpush1.msra.mxu0 0.0
    %264 = vmatprep.subr.mxu0 0.0
    %265 = vmatpush1.msra.mxu0 0.0
    %266 = vmatprep.subr.mxu0 0.0
    %267 = vmatpush1.msra.mxu0 0.0
    %268 = vmatprep.subr.mxu0 0.0
    %269 = vmatpush1.msra.mxu0 0.0
    %270 = vmatprep.subr.mxu0 0.0
    %271 = vmatpush1.msra.mxu0 0.0
    %272 = vmatprep.subr.mxu0 0.0
    %273 = vmatpush1.msra.mxu0 0.0
    %274 = vmatprep.subr.mxu0 0.0
    %275 = vmatpush1.msra.mxu0 0.0
    %276 = vmatprep.subr.mxu0 0.0
    %277 = vmatpush1.msra.mxu0 0.0
    %278 = vmatprep.subr.mxu0 0.0
    %279 = vmatpush1.msra.mxu0 0.0
    %280 = vmatprep.subr.mxu0 0.0
    %281 = vmatpush1.msra.mxu0 0.0
    %282 = vmatprep.subr.mxu0 0.0
    %283 = vmatpush1.msra.mxu0 0.0
    %284 = vmatprep.subr.mxu0 0.0
    %285 = vmatpush1.msra.mxu0 0.0
    %286 = vmatprep.mubr.f32.mxu0 0.0
    %287 = vmatmul.mubr.f32.gmra.mrb[0].mxu0 %v221
    %v288 = vpop.f32.mrb[0].mxu0
    %v289 = vadd.f32 %v218, %v288
    %v290 = vpop.f32.mrb[0].mxu0
    %291 = vdwg.mxu0
    %v292 = vmax.f32 %v289, -0.1
    %v293 = vmin.f32 %v292, 0.1
    %v294 = vsub.f32 %v289, %v293
    %v295 = vsub.f32 %v294, %v293
    %v296 = vadd.f32 %v144, %v295
    %297 = vmatprep.subr.mxu0 0.0
    %298 = vmatpush1.msra.mxu0 %v57
    %299 = vmatprep.subr.mxu0 0.0
    %300 = vmatpush1.msra.mxu0 %v58
    %301 = vmatprep.subr.mxu0 0.0
    %302 = vmatpush1.msra.mxu0 %v59
    %303 = vmatprep.subr.mxu0 0.0
    %304 = vmatpush1.msra.mxu0 %v60
    %305 = vmatprep.subr.mxu0 0.0
    %306 = vmatpush1.msra.mxu0 %v61
    %307 = vmatprep.subr.mxu0 0.0
    %308 = vmatpush1.msra.mxu0 %v62
    %309 = vmatprep.subr.mxu0 0.0
    %310 = vmatpush1.msra.mxu0 %v63
    %311 = vmatprep.subr.mxu0 0.0
    %312 = vmatpush1.msra.mxu0 %v64
    %313 = vmatprep.subr.mxu0 0.0
    %314 = vmatpush1.msra.mxu0 %v65
    %315 = vmatprep.subr.mxu0 0.0
    %316 = vmatpush1.msra.mxu0 %v66
    %317 = vmatprep.subr.mxu0 0.0
    %318 = vmatpush1.msra.mxu0 %v67
    %319 = vmatprep.subr.mxu0 0.0
    %320 = vmatpush1.msra.mxu0 %v68
    %321 = vmatprep.subr.mxu0 0.0
    %322 = vmatpush1.msra.mxu0 %v69
    %323 = vmatprep.subr.mxu0 0.0
    %324 = vmatpush1.msra.mxu0 %v70
    %325 = vmatprep.subr.mxu0 0.0
    %326 = vmatpush1.msra.mxu0 %v71
    %327 = vmatprep.subr.mxu0 0.0
    %328 = vmatpush1.msra.mxu0 %v72
    %329 = vmatprep.subr.mxu0 0.0
    %330 = vmatpush1.msra.mxu0 0.0
    %331 = vmatprep.subr.mxu0 0.0
    %332 = vmatpush1.msra.mxu0 0.0
    %333 = vmatprep.subr.mxu0 0.0
    %334 = vmatpush1.msra.mxu0 0.0
    %335 = vmatprep.subr.mxu0 0.0
    %336 = vmatpush1.msra.mxu0 0.0
    %337 = vmatprep.subr.mxu0 0.0
    %338 = vmatpush1.msra.mxu0 0.0
    %339 = vmatprep.subr.mxu0 0.0
    %340 = vmatpush1.msra.mxu0 0.0
    %341 = vmatprep.subr.mxu0 0.0
    %342 = vmatpush1.msra.mxu0 0.0
    %343 = vmatprep.subr.mxu0 0.0
    %344 = vmatpush1.msra.mxu0 0.0
    %345 = vmatprep.subr.mxu0 0.0
    %346 = vmatpush1.msra.mxu0 0.0
    %347 = vmatprep.subr.mxu0 0.0
    %348 = vmatpush1.msra.mxu0 0.0
    %349 = vmatprep.subr.mxu0 0.0
    %350 = vmatpush1.msra.mxu0 0.0
    %351 = vmatprep.subr.mxu0 0.0
    %352 = vmatpush1.msra.mxu0 0.0
    %353 = vmatprep.subr.mxu0 0.0
    %354 = vmatpush1.msra.mxu0 0.0
    %355 = vmatprep.subr.mxu0 0.0
    %356 = vmatpush1.msra.mxu0 0.0
    %357 = vmatprep.subr.mxu0 0.0
    %358 = vmatpush1.msra.mxu0 0.0
    %359 = vmatprep.subr.mxu0 0.0
    %360 = vmatpush1.msra.mxu0 0.0
    %361 = vmatprep.mubr.f32.mxu0 0.0
    %362 = vmatmul.mubr.f32.gmra.mrb[0].mxu0 %v296
    %v363 = vpop.f32.mrb[0].mxu0
    %v364 = vadd.f32 %v293, %v363
    %v365 = vpop.f32.mrb[0].mxu0
    %366 = vdwg.mxu0
    %v367 = vmax.f32 %v364, -0.1
    %v368 = vmin.f32 %v367, 0.1
    %v369 = vsub.f32 %v364, %v368
    %v370 = vsub.f32 %v369, %v368
    %v371 = vadd.f32 %v144, %v370
    %372 = vmatprep.subr.mxu0 0.0
    %373 = vmatpush1.msra.mxu0 %v57
    %374 = vmatprep.subr.mxu0 0.0
    %375 = vmatpush1.msra.mxu0 %v58
    %376 = vmatprep.subr.mxu0 0.0
    %377 = vmatpush1.msra.mxu0 %v59
    %378 = vmatprep.subr.mxu0 0.0
    %379 = vmatpush1.msra.mxu0 %v60
    %380 = vmatprep.subr.mxu0 0.0
    %381 = vmatpush1.msra.mxu0 %v61
    %382 = vmatprep.subr.mxu0 0.0
    %383 = vmatpush1.msra.mxu0 %v62
    %384 = vmatprep.subr.mxu0 0.0
    %385 = vmatpush1.msra.mxu0 %v63
    %386 = vmatprep.subr.mxu0 0.0
    %387 = vmatpush1.msra.mxu0 %v64
    %388 = vmatprep.subr.mxu0 0.0
    %389 = vmatpush1.msra.mxu0 %v65
    %390 = vmatprep.subr.mxu0 0.0
    %391 = vmatpush1.msra.mxu0 %v66
    %392 = vmatprep.subr.mxu0 0.0
    %393 = vmatpush1.msra.mxu0 %v67
    %394 = vmatprep.subr.mxu0 0.0
    %395 = vmatpush1.msra.mxu0 %v68
    %396 = vmatprep.subr.mxu0 0.0
    %397 = vmatpush1.msra.mxu0 %v69
    %398 = vmatprep.subr.mxu0 0.0
    %399 = vmatpush1.msra.mxu0 %v70
    %400 = vmatprep.subr.mxu0 0.0
    %401 = vmatpush1.msra.mxu0 %v71
    %402 = vmatprep.subr.mxu0 0.0
    %403 = vmatpush1.msra.mxu0 %v72
    %404 = vmatprep.subr.mxu0 0.0
    %405 = vmatpush1.msra.mxu0 0.0
    %406 = vmatprep.subr.mxu0 0.0
    %407 = vmatpush1.msra.mxu0 0.0
    %408 = vmatprep.subr.mxu0 0.0
    %409 = vmatpush1.msra.mxu0 0.0
    %410 = vmatprep.subr.mxu0 0.0
    %411 = vmatpush1.msra.mxu0 0.0
    %412 = vmatprep.subr.mxu0 0.0
    %413 = vmatpush1.msra.mxu0 0.0
    %414 = vmatprep.subr.mxu0 0.0
    %415 = vmatpush1.msra.mxu0 0.0
    %416 = vmatprep.subr.mxu0 0.0
    %417 = vmatpush1.msra.mxu0 0.0
    %418 = vmatprep.subr.mxu0 0.0
    %419 = vmatpush1.msra.mxu0 0.0
    %420 = vmatprep.subr.mxu0 0.0
    %421 = vmatpush1.msra.mxu0 0.0
    %422 = vmatprep.subr.mxu0 0.0
    %423 = vmatpush1.msra.mxu0 0.0
    %424 = vmatprep.subr.mxu0 0.0
    %425 = vmatpush1.msra.mxu0 0.0
    %426 = vmatprep.subr.mxu0 0.0
    %427 = vmatpush1.msra.mxu0 0.0
    %428 = vmatprep.subr.mxu0 0.0
    %429 = vmatpush1.msra.mxu0 0.0
    %430 = vmatprep.subr.mxu0 0.0
    %431 = vmatpush1.msra.mxu0 0.0
    %432 = vmatprep.subr.mxu0 0.0
    %433 = vmatpush1.msra.mxu0 0.0
    %434 = vmatprep.subr.mxu0 0.0
    %435 = vmatpush1.msra.mxu0 0.0
    %436 = vmatprep.mubr.f32.mxu0 0.0
    %437 = vmatmul.mubr.f32.gmra.mrb[0].mxu0 %v371
    %v438 = vpop.f32.mrb[0].mxu0
    %v439 = vadd.f32 %v368, %v438
    %v440 = vpop.f32.mrb[0].mxu0
    %441 = vdwg.mxu0
    %v442 = vmax.f32 %v439, -0.1
    %v443 = vmin.f32 %v442, 0.1
    %v444 = vsub.f32 %v439, %v443
    %445 = vst [vmem:[#allocation8] sm:$0xff] %v444
    // Predicated region
    $region26: #{tpu_custom_call.1} parent=1 // pred_check
      _
    $region27: #{tpu_custom_call.1} parent=1 // pred_check_branch
      %447 = sbr.rel (0) target = $region29
    $region28: #{tpu_custom_call.1} parent=1 // pred_region
      %s449 = ssub.s32 128, 128
      %450 = vsyncadd [#allocation4], %s449
      %s452 = sshll.u32 [#allocation8], 4
      %s453 = int_to_ptr.vmem [resolvable:$true] %s452
      %455 = dma.vmem_to_hbm [thread:$0]  %s453, 128, %s3, [#allocation4]
    $region29: #{tpu_custom_call.1} parent=1 // pred_fallthru
      _
    // Predicated region
    $region30: #{tpu_custom_call.1} parent=1 // pred_check
      _
    $region31: #{tpu_custom_call.1} parent=1 // pred_check_branch
      %457 = sbr.rel (0) target = $region33
    $region32: #{tpu_custom_call.1} parent=1 // pred_region
      %458 = dma.done [#allocation4], 128
    $region33: #{tpu_custom_call.1} parent=1 // pred_fallthru
      _
    %459 = vsyncpa [#allocation3], 1
    %460 = vsyncpa [#allocation6], 1
    %461 = vsyncpa [#allocation4], 1

</llo_original>
